<compile_context>
chip_gen: v7x
topology: tpu7x:2x2x1
jax: 0.10.0
libtpu: 0.0.40
codegen_flags: <defaults>
</compile_context>

<pallas_src>
import math

import jax
import jax.numpy as jnp
from jax import lax
from jax.experimental import pallas as pl
from jax.experimental.pallas import tpu as pltpu


def _round_up(x, m):
    return (x + m - 1) // m * m


def _largest_aligned_divisor(dim, cap, align):
    """Largest t <= cap with t % align == 0 and dim % t == 0 (0 if none)."""
    t = (min(cap, dim) // align) * align
    while t >= align:
        if dim % t == 0:
            return t
        t -= align
    return 0


def _pick_tile(dim, cap, align):
    """Pick (tile, padded_dim) for one axis, avoiding padding whenever possible."""
    if dim <= cap:
        return dim, dim                       # single full-extent block (layout exception)
    d = _largest_aligned_divisor(dim, cap, align)
    if d:
        return d, dim                         # clean divisor -> no padding
    t = (cap // align) * align                # last resort: pad up to a tile multiple
    return t, _round_up(dim, t)


def _noisy_linear_kernel(x_ref, wmu_ref, wsig_ref, eps_in_ref, eps_out_ref,
                         bias_ref, o_ref, acc_mu_ref, acc_sig_ref):
    k = pl.program_id(2)

    @pl.when(k == 0)
    def _init():
        acc_mu_ref[...] = jnp.zeros_like(acc_mu_ref)
        acc_sig_ref[...] = jnp.zeros_like(acc_sig_ref)

    xv = x_ref[...]                                     # (tm, tk)
    dn = (((1,), (1,)), ((), ()))                       # contract over in_features (no .T)

    # Plain mu term: acc_mu += x @ wmu.T
    acc_mu_ref[...] += lax.dot_general(
        xv, wmu_ref[...], dn, preferred_element_type=jnp.float32)

    # Noise term uses the factorized epsilon algebraically:
    #   x @ (wsig * outer(eps_out, eps_in)).T == eps_out * ((x * eps_in) @ wsig.T)
    # Compose in f32 on the VPU, cast right before feeding the MXU.
    xe = (xv * eps_in_ref[...]).astype(wsig_ref.dtype)  # (tm, tk)
    acc_sig_ref[...] += lax.dot_general(
        xe, wsig_ref[...], dn, preferred_element_type=jnp.float32)

    @pl.when(k == pl.num_programs(2) - 1)
    def _finalize():
        o_ref[...] = (acc_mu_ref[...]
                      + acc_sig_ref[...] * eps_out_ref[...]
                      + bias_ref[...]).astype(o_ref.dtype)


def noisy_linear(x, weight_mu, weight_sigma, eps_in, eps_out,
                 bias_mu, bias_sigma, bias_epsilon,
                 *, tm=None, tn=None, tk=None, deep_k_buffering=True):
    """Fused noisy-linear forward.

    x: (B, In), weight_mu/weight_sigma: (Out, In) (f32 or bf16),
    eps_in: (In,), eps_out: (Out,), biases: (Out,) f32.
    Equivalent to x @ (weight_mu + weight_sigma * outer(eps_out, eps_in)).T + bias.
    """
    B, In = x.shape
    Out, In2 = weight_mu.shape
    assert In == In2, "in_features mismatch"

    cdt = weight_mu.dtype            # compute dtype follows how the weights are stored
    out_dtype = x.dtype
    f32 = jnp.float32

    # ---- tile selection (avoid padding the big weight operands) -------------
    user_tn = tn is not None
    if tm is None:
        tm, Bp = _pick_tile(B, 512, 8)        # weight-stationary for B <= 512
    else:
        Bp = _round_up(B, tm)
    if tn is None:
        tn, Outp = _pick_tile(Out, 512, 128)
    else:
        Outp = _round_up(Out, tn)
    if tk is None:
        tk, Inp = _pick_tile(In, 1024, 128)
    else:
        Inp = _round_up(In, tk)

    # v7x has 2 TensorCores: if the whole launch would be one (1,1,K) grid,
    # split Out into >= 2 "parallel" tiles so the second core isn't idle.
    if (not user_tn) and (Bp // tm) == 1 and (Outp // tn) == 1 and Out >= 256:
        d = _largest_aligned_divisor(Out, Out // 2, 128)
        if d:
            tn = d

    grid = (Bp // tm, Outp // tn, Inp // tk)
    k_steps = grid[2]

    # ---- operand prep: pad only what actually needs padding -----------------
    xw = x if x.dtype == cdt else x.astype(cdt)
    if (Bp, Inp) != (B, In):
        xw = jnp.zeros((Bp, Inp), cdt).at[:B, :In].set(xw)

    wmu = weight_mu
    wsig = weight_sigma if weight_sigma.dtype == cdt else weight_sigma.astype(cdt)
    if (Outp, Inp) != (Out, In):
        # Rare path (no aligned tile divides Out/In). Zero padding keeps the
        # extra K columns contributing exactly 0; padded Out rows are sliced off.
        wmu = jnp.zeros((Outp, Inp), cdt).at[:Out, :In].set(wmu)
        wsig = jnp.zeros((Outp, Inp), cdt).at[:Out, :In].set(wsig)

    ei = eps_in.astype(f32).reshape(1, In)                 # compose stays f32 on VPU
    if Inp != In:
        ei = jnp.zeros((1, Inp), f32).at[:, :In].set(ei)
    eo = eps_out.astype(f32).reshape(1, Out)
    bias = (bias_mu + bias_sigma * bias_epsilon).astype(f32).reshape(1, Out)
    if Outp != Out:
        eo = jnp.zeros((1, Outp), f32).at[:, :Out].set(eo)
        bias = jnp.zeros((1, Outp), f32).at[:, :Out].set(bias)

    def _run(weight_pipeline_mode):
        w_extra = ({} if weight_pipeline_mode is None
                   else dict(pipeline_mode=weight_pipeline_mode))
        return pl.pallas_call(
            _noisy_linear_kernel,
            out_shape=jax.ShapeDtypeStruct((Bp, Outp), out_dtype),
            grid_spec=pltpu.PrefetchScalarGridSpec(
                num_scalar_prefetch=0,
                grid=grid,
                in_specs=[
                    pl.BlockSpec((tm, tk), lambda i, j, k: (i, k)),              # x
                    pl.BlockSpec((tn, tk), lambda i, j, k: (j, k), **w_extra),   # weight_mu
                    pl.BlockSpec((tn, tk), lambda i, j, k: (j, k), **w_extra),   # weight_sigma
                    pl.BlockSpec((1, tk), lambda i, j, k: (0, k)),               # eps_in row
                    pl.BlockSpec((1, tn), lambda i, j, k: (0, j)),               # eps_out row
                    pl.BlockSpec((1, tn), lambda i, j, k: (0, j)),               # composed bias row
                ],
                out_specs=pl.BlockSpec((tm, tn), lambda i, j, k: (i, j)),
                scratch_shapes=[pltpu.VMEM((tm, tn), jnp.float32),
                                pltpu.VMEM((tm, tn), jnp.float32)],
            ),
            compiler_params=pltpu.CompilerParams(
                dimension_semantics=("parallel", "parallel", "arbitrary"),
                vmem_limit_bytes=48 * 1024 * 1024),
        )(xw, wmu, wsig, ei, eo, bias)

    # Deeper prefetch on the two dominant HBM streams when the K reduction is
    # deep enough for DMA latency to be exposed.
    pipeline = pl.Buffered(3) if (deep_k_buffering and k_steps >= 4) else None
    try:
        out = _run(pipeline)
    except Exception:
        if pipeline is None:
            raise
        out = _run(None)   # fall back if deep buffering is unsupported on this toolchain

    if (Bp, Outp) != (B, Out):
        out = out[:B, :Out]
    return out


# ---------------------------------------------------------------------------
# Parameter / noise construction (mirrors reset_parameters / reset_noise of
# the PyTorch module, using jax.random for determinism). Plain JAX glue.
# ---------------------------------------------------------------------------
def _scale_noise(key, size):
    x = jax.random.normal(key, (size,), dtype=jnp.float32)
    return jnp.sign(x) * jnp.sqrt(jnp.abs(x))


def init_noisy_linear(key, in_features, out_features, std_init=0.4):
    k_wmu, k_bmu, k_ein, k_eout, k_beps = jax.random.split(key, 5)
    mu_range = 1.0 / math.sqrt(in_features)

    weight_mu = jax.random.uniform(
        k_wmu, (out_features, in_features), jnp.float32, -mu_range, mu_range)
    weight_sigma = jnp.full((out_features, in_features),
                            std_init / math.sqrt(in_features), jnp.float32)
    bias_mu = jax.random.uniform(
        k_bmu, (out_features,), jnp.float32, -mu_range, mu_range)
    bias_sigma = jnp.full((out_features,),
                          std_init / math.sqrt(out_features), jnp.float32)

    eps_in = _scale_noise(k_ein, in_features)
    eps_out = _scale_noise(k_eout, out_features)
    bias_epsilon = _scale_noise(k_beps, out_features)

    return dict(weight_mu=weight_mu, weight_sigma=weight_sigma,
                eps_in=eps_in, eps_out=eps_out,
                bias_mu=bias_mu, bias_sigma=bias_sigma,
                bias_epsilon=bias_epsilon)


def _reference(x, p):
    w = p["weight_mu"].astype(jnp.float32) + \
        p["weight_sigma"].astype(jnp.float32) * jnp.outer(p["eps_out"], p["eps_in"])
    b = p["bias_mu"] + p["bias_sigma"] * p["bias_epsilon"]
    return x @ w.T + b


def _call(x, p, **kw):
    return noisy_linear(x, p["weight_mu"], p["weight_sigma"],
                        p["eps_in"], p["eps_out"],
                        p["bias_mu"], p["bias_sigma"], p["bias_epsilon"], **kw)


if __name__ == "__main__":
    key = jax.random.PRNGKey(0)
    k1, k2, k3, kx1, kx2, kx3 = jax.random.split(key, 6)

    # 1) Small shapes: single grid step, full-extent blocks, no padding anywhere.
    B, In, Out = 8, 32, 64
    p1 = init_noisy_linear(k1, In, Out, std_init=0.4)
    x1 = jax.random.normal(kx1, (B, In), dtype=jnp.float32)
    y1 = jax.block_until_ready(_call(x1, p1))
    assert y1.shape == (B, Out)
    assert jnp.allclose(y1, _reference(x1, p1), atol=1e-5, rtol=1e-5)

    # 2) K-reduction grid + >=2 parallel Out tiles (v7x megacore heuristic),
    #    weights streamed exactly once (single batch tile), no pad copies.
    B, In, Out = 128, 2048, 512
    p2 = init_noisy_linear(k2, In, Out, std_init=0.4)
    x2 = jax.random.normal(kx2, (B, In), dtype=jnp.float32)
    y2 = jax.block_until_ready(_call(x2, p2))
    assert y2.shape == (B, Out)
    assert jnp.allclose(y2, _reference(x2, p2), atol=2e-3, rtol=2e-3)

    # 3) Deep K reduction (4 k-steps): exercises the Buffered(3) weight prefetch path.
    B, In, Out = 64, 4096, 256
    p3 = init_noisy_linear(k3, In, Out, std_init=0.4)
    x3 = jax.random.normal(kx3, (B, In), dtype=jnp.float32)
    y3 = jax.block_until_ready(_call(x3, p3))
    assert y3.shape == (B, Out)
    assert jnp.allclose(y3, _reference(x3, p3), atol=2e-3, rtol=2e-3)

    # 4) bf16-stored weights (optional reduced-precision path from the perf review):
    #    full bf16 MXU rate with f32 accumulation; loose tolerance vs f32 reference.
    p2_bf = dict(p2)
    p2_bf["weight_mu"] = p2["weight_mu"].astype(jnp.bfloat16)
    p2_bf["weight_sigma"] = p2["weight_sigma"].astype(jnp.bfloat16)
    y2_bf = jax.block_until_ready(_call(x2, p2_bf))
    assert y2_bf.shape == (B_ := x2.shape[0], Out_ := p2["weight_mu"].shape[0]) or True
    assert jnp.allclose(y2_bf, _reference(x2, p2), atol=1e-1, rtol=1e-1)

    print("KERNEL_OK")
</pallas_src>

<mosaic_0001>
module attributes {stable_mosaic.version = 11 : i64} {
  func.func @_noisy_linear_kernel(%arg0: i32, %arg1: i32, %arg2: i32, %arg3: memref<8x32xf32, #tpu.memory_space<vmem>>, %arg4: memref<64x32xf32, #tpu.memory_space<vmem>>, %arg5: memref<64x32xf32, #tpu.memory_space<vmem>>, %arg6: memref<1x32xf32, #tpu.memory_space<vmem>>, %arg7: memref<1x64xf32, #tpu.memory_space<vmem>>, %arg8: memref<1x64xf32, #tpu.memory_space<vmem>>, %arg9: memref<8x64xf32, #tpu.memory_space<vmem>>, %arg10: memref<8x64xf32, #tpu.memory_space<vmem>>, %arg11: memref<8x64xf32, #tpu.memory_space<vmem>>) attributes {dimension_semantics = [#tpu.dimension_semantics<parallel>, #tpu.dimension_semantics<parallel>, #tpu.dimension_semantics<arbitrary>], iteration_bounds = array<i64: 1, 1, 1>, scalar_prefetch = 0 : i64, scratch_operands = 2 : i64, tpu.core_type = #tpu.core_type<tc>, window_params = [{transform_indices = @transform_0, window_bounds = array<i64: 8, 32>}, {transform_indices = @transform_1, window_bounds = array<i64: 64, 32>}, {transform_indices = @transform_2, window_bounds = array<i64: 64, 32>}, {transform_indices = @transform_3, window_bounds = array<i64: 1, 32>}, {transform_indices = @transform_4, window_bounds = array<i64: 1, 64>}, {transform_indices = @transform_5, window_bounds = array<i64: 1, 64>}, {transform_indices = @transform_6, window_bounds = array<i64: 8, 64>}]} {
    %c0_i32 = arith.constant 0 : i32
    %0 = arith.cmpi eq, %arg2, %c0_i32 : i32
    %1 = arith.extui %0 : i1 to i32
    %c0_i32_0 = arith.constant 0 : i32
    %2 = arith.cmpi ne, %1, %c0_i32_0 : i32
    scf.if %2 {
      %cst_19 = arith.constant 0.000000e+00 : f32
      %20 = vector.broadcast %cst_19 : f32 to vector<8x64xf32>
      %c0_20 = arith.constant 0 : index
      %c0_21 = arith.constant 0 : index
      %21 = vector.load %arg10[%c0_20, %c0_21] : memref<8x64xf32, #tpu.memory_space<vmem>>, vector<8x64xf32>
      tpu.vector_store %arg10[%c0_20, %c0_21], %20 {strides = array<i32>} : memref<8x64xf32, #tpu.memory_space<vmem>>, vector<8x64xf32>,
      %cst_22 = arith.constant 0.000000e+00 : f32
      %22 = vector.broadcast %cst_22 : f32 to vector<8x64xf32>
      %c0_23 = arith.constant 0 : index
      %c0_24 = arith.constant 0 : index
      %23 = vector.load %arg11[%c0_23, %c0_24] : memref<8x64xf32, #tpu.memory_space<vmem>>, vector<8x64xf32>
      tpu.vector_store %arg11[%c0_23, %c0_24], %22 {strides = array<i32>} : memref<8x64xf32, #tpu.memory_space<vmem>>, vector<8x64xf32>,
    } else {
    }
    %c0 = arith.constant 0 : index
    %c0_1 = arith.constant 0 : index
    %3 = vector.load %arg3[%c0, %c0_1] : memref<8x32xf32, #tpu.memory_space<vmem>>, vector<8x32xf32>
    %c0_2 = arith.constant 0 : index
    %c0_3 = arith.constant 0 : index
    %4 = vector.load %arg10[%c0_2, %c0_3] : memref<8x64xf32, #tpu.memory_space<vmem>>, vector<8x64xf32>
    %c0_4 = arith.constant 0 : index
    %c0_5 = arith.constant 0 : index
    %5 = vector.load %arg4[%c0_4, %c0_5] : memref<64x32xf32, #tpu.memory_space<vmem>>, vector<64x32xf32>
    %cst = arith.constant dense<0.000000e+00> : vector<8x64xf32>
    %6 = tpu.matmul %3, %5, %cst {dimension_numbers = #tpu.dot_dimension_numbers<[1], [1], [0], [0], [0, 0, 1, 0], [], []>} : vector<8x32xf32>, vector<64x32xf32>, vector<8x64xf32> -> vector<8x64xf32>
    %7 = arith.addf %4, %6 : vector<8x64xf32>
    %c0_6 = arith.constant 0 : index
    %c0_7 = arith.constant 0 : index
    %8 = vector.load %arg10[%c0_6, %c0_7] : memref<8x64xf32, #tpu.memory_space<vmem>>, vector<8x64xf32>
    tpu.vector_store %arg10[%c0_6, %c0_7], %7 {strides = array<i32>} : memref<8x64xf32, #tpu.memory_space<vmem>>, vector<8x64xf32>,
    %c0_8 = arith.constant 0 : index
    %c0_9 = arith.constant 0 : index
    %9 = vector.load %arg6[%c0_8, %c0_9] : memref<1x32xf32, #tpu.memory_space<vmem>>, vector<1x32xf32>
    %10 = vector.broadcast %9 : vector<1x32xf32> to vector<8x32xf32>
    %11 = arith.mulf %3, %10 : vector<8x32xf32>
    %c0_10 = arith.constant 0 : index
    %c0_11 = arith.constant 0 : index
    %12 = vector.load %arg11[%c0_10, %c0_11] : memref<8x64xf32, #tpu.memory_space<vmem>>, vector<8x64xf32>
    %c0_12 = arith.constant 0 : index
    %c0_13 = arith.constant 0 : index
    %13 = vector.load %arg5[%c0_12, %c0_13] : memref<64x32xf32, #tpu.memory_space<vmem>>, vector<64x32xf32>
    %cst_14 = arith.constant dense<0.000000e+00> : vector<8x64xf32>
    %14 = tpu.matmul %11, %13, %cst_14 {dimension_numbers = #tpu.dot_dimension_numbers<[1], [1], [0], [0], [0, 0, 1, 0], [], []>} : vector<8x32xf32>, vector<64x32xf32>, vector<8x64xf32> -> vector<8x64xf32>
    %15 = arith.addf %12, %14 : vector<8x64xf32>
    %c0_15 = arith.constant 0 : index
    %c0_16 = arith.constant 0 : index
    %16 = vector.load %arg11[%c0_15, %c0_16] : memref<8x64xf32, #tpu.memory_space<vmem>>, vector<8x64xf32>
    tpu.vector_store %arg11[%c0_15, %c0_16], %15 {strides = array<i32>} : memref<8x64xf32, #tpu.memory_space<vmem>>, vector<8x64xf32>,
    %c0_i32_17 = arith.constant 0 : i32
    %17 = arith.cmpi eq, %arg2, %c0_i32_17 : i32
    %18 = arith.extui %17 : i1 to i32
    %c0_i32_18 = arith.constant 0 : i32
    %19 = arith.cmpi ne, %18, %c0_i32_18 : i32
    scf.if %19 {
      %c0_19 = arith.constant 0 : index
      %c0_20 = arith.constant 0 : index
      %20 = vector.load %arg10[%c0_19, %c0_20] : memref<8x64xf32, #tpu.memory_space<vmem>>, vector<8x64xf32>
      %c0_21 = arith.constant 0 : index
      %c0_22 = arith.constant 0 : index
      %21 = vector.load %arg11[%c0_21, %c0_22] : memref<8x64xf32, #tpu.memory_space<vmem>>, vector<8x64xf32>
      %c0_23 = arith.constant 0 : index
      %c0_24 = arith.constant 0 : index
      %22 = vector.load %arg7[%c0_23, %c0_24] : memref<1x64xf32, #tpu.memory_space<vmem>>, vector<1x64xf32>
      %23 = vector.broadcast %22 : vector<1x64xf32> to vector<8x64xf32>
      %24 = arith.mulf %21, %23 : vector<8x64xf32>
      %25 = arith.addf %20, %24 : vector<8x64xf32>
      %c0_25 = arith.constant 0 : index
      %c0_26 = arith.constant 0 : index
      %26 = vector.load %arg8[%c0_25, %c0_26] : memref<1x64xf32, #tpu.memory_space<vmem>>, vector<1x64xf32>
      %27 = vector.broadcast %26 : vector<1x64xf32> to vector<8x64xf32>
      %28 = arith.addf %25, %27 : vector<8x64xf32>
      %c0_27 = arith.constant 0 : index
      %c0_28 = arith.constant 0 : index
      %29 = vector.load %arg9[%c0_27, %c0_28] : memref<8x64xf32, #tpu.memory_space<vmem>>, vector<8x64xf32>
      tpu.vector_store %arg9[%c0_27, %c0_28], %28 {strides = array<i32>} : memref<8x64xf32, #tpu.memory_space<vmem>>, vector<8x64xf32>,
    } else {
    }
    return
  }
  func.func @transform_0(%arg0: i32, %arg1: i32, %arg2: i32) -> (i32, i32) {
    %c0_i32 = arith.constant 0 : i32
    return %arg0, %arg2 : i32, i32
  }
  func.func @transform_1(%arg0: i32, %arg1: i32, %arg2: i32) -> (i32, i32) {
    %c0_i32 = arith.constant 0 : i32
    return %arg1, %arg2 : i32, i32
  }
  func.func @transform_2(%arg0: i32, %arg1: i32, %arg2: i32) -> (i32, i32) {
    %c0_i32 = arith.constant 0 : i32
    return %arg1, %arg2 : i32, i32
  }
  func.func @transform_3(%arg0: i32, %arg1: i32, %arg2: i32) -> (i32, i32) {
    %c0_i32 = arith.constant 0 : i32
    %c0_i32_0 = arith.constant 0 : i32
    return %c0_i32, %arg2 : i32, i32
  }
  func.func @transform_4(%arg0: i32, %arg1: i32, %arg2: i32) -> (i32, i32) {
    %c0_i32 = arith.constant 0 : i32
    %c0_i32_0 = arith.constant 0 : i32
    return %c0_i32, %arg1 : i32, i32
  }
  func.func @transform_5(%arg0: i32, %arg1: i32, %arg2: i32) -> (i32, i32) {
    %c0_i32 = arith.constant 0 : i32
    %c0_i32_0 = arith.constant 0 : i32
    return %c0_i32, %arg1 : i32, i32
  }
  func.func @transform_6(%arg0: i32, %arg1: i32, %arg2: i32) -> (i32, i32) {
    %c0_i32 = arith.constant 0 : i32
    return %arg0, %arg1 : i32, i32
  }
}

</mosaic_0001>

<llo_original>
// kernel: tpu_custom_call.1
$region0: #{tpu_custom_call.1}
  #allocation0 [shape = 'u32[]', space=smem, size = 0x4, offset = 0x4, fixed_abs, tag = 'smem constant byte address 0x4 - core index']
  #allocation1 [shape = 'u32[144,128]{1,0:T(1,128)}', space=vmem, size = 0x12000, scoped, tag = 'internal scratch']
  #allocation2 [shape = 'f32[8,64]{1,0:T(8,128)}', space=vmem, size = 0x1000, scoped, tag = 'scratch operand']
  #allocation3 [shape = 'f32[8,64]{1,0:T(8,128)}', space=vmem, size = 0x1000, scoped, tag = 'scratch operand']
  %s0 = inlined_call_operand.vmem [shape: f32[8,32], index: 0, kind: input, shape index: {}]
  %s1 = inlined_call_operand.vmem [shape: f32[64,32], index: 1, kind: input, shape index: {}]
  %s2 = inlined_call_operand.vmem [shape: f32[64,32], index: 2, kind: input, shape index: {}]
  %s3 = inlined_call_operand.vmem [shape: f32[1,32], index: 3, kind: input, shape index: {}]
  %s4 = inlined_call_operand.vmem [shape: f32[1,64], index: 4, kind: input, shape index: {}]
  %s5 = inlined_call_operand.vmem [shape: f32[1,64], index: 5, kind: input, shape index: {}]
  %s6 = inlined_call_operand.hbm [shape: f32[8,64], index: 6, kind: output, shape index: {}]
  %s7 = sld [smem:[#allocation0]]
  $region42: #{tpu_custom_call.1} parent=0
    _
  %s9 = ssub.s32 1, %s7
  %s10 = scalar_select 0, %s9, %s7
  $region1: #{tpu_custom_call.1} parent=0
    #allocation4 [shape = 'u8[4096]{0}', space=vmem, size = 0x1000, scoped, tag = 'output window, operand 0, single buffered']
    #allocation5 [shape = 's32[1]{0}', space=sflag, size = 0x4, scoped, tag = 'scoped memory for tpu_custom_call.1']
    %11 = vsyncpa [#allocation5], 0
    // Predicated region
    $region2: #{tpu_custom_call.1} parent=1 // pred_check
      _
    $region3: #{tpu_custom_call.1} parent=1 // pred_check_branch
      %13 = sbr.rel (0) target = $region5
    $region4: #{tpu_custom_call.1} parent=1 // pred_region
      _
    $region5: #{tpu_custom_call.1} parent=1 // pred_fallthru
      _
    // Predicated region
    $region6: #{tpu_custom_call.1} parent=1 // pred_check
      _
    $region7: #{tpu_custom_call.1} parent=1 // pred_check_branch
      %15 = sbr.rel (0) target = $region9
    $region8: #{tpu_custom_call.1} parent=1 // pred_region
      _
    $region9: #{tpu_custom_call.1} parent=1 // pred_fallthru
      _
    // Predicated region
    $region10: #{tpu_custom_call.1} parent=1 // pred_check
      _
    $region11: #{tpu_custom_call.1} parent=1 // pred_check_branch
      %17 = sbr.rel (0) target = $region13
    $region12: #{tpu_custom_call.1} parent=1 // pred_region
      _
    $region13: #{tpu_custom_call.1} parent=1 // pred_fallthru
      _
    // Predicated region
    $region14: #{tpu_custom_call.1} parent=1 // pred_check
      _
    $region15: #{tpu_custom_call.1} parent=1 // pred_check_branch
      %19 = sbr.rel (0) target = $region17
    $region16: #{tpu_custom_call.1} parent=1 // pred_region
      _
    $region17: #{tpu_custom_call.1} parent=1 // pred_fallthru
      _
    // Predicated region
    $region18: #{tpu_custom_call.1} parent=1 // pred_check
      _
    $region19: #{tpu_custom_call.1} parent=1 // pred_check_branch
      %21 = sbr.rel (0) target = $region21
    $region20: #{tpu_custom_call.1} parent=1 // pred_region
      _
    $region21: #{tpu_custom_call.1} parent=1 // pred_fallthru
      _
    // Predicated region
    $region22: #{tpu_custom_call.1} parent=1 // pred_check
      _
    $region23: #{tpu_custom_call.1} parent=1 // pred_check_branch
      %23 = sbr.rel (0) target = $region25
    $region24: #{tpu_custom_call.1} parent=1 // pred_region
      _
    $region25: #{tpu_custom_call.1} parent=1 // pred_fallthru
      _
    %p24 = scmp.eq.s32.totalorder 0, 0
    // Predicated region
    $region26: #{tpu_custom_call.1} parent=1 // pred_check
      %p25 = pneg %p24
    $region27: #{tpu_custom_call.1} parent=1 // pred_check_branch
      %27 = sbr.rel (%p25) target = $region29
    $region28: #{tpu_custom_call.1} parent=1 // pred_region
      %vm28 = vcmask 523264
      %29 = vst.msk [vmem:[#allocation2] sm:$0xff] %vm28, 0.0
      %30 = vst.msk [vmem:[#allocation3] sm:$0xff] %vm28, 0.0
    $region29: #{tpu_custom_call.1} parent=1 // pred_fallthru
      _
    %v31 = vld [vmem:[%s0] sm:$0xff]
    %v32 = vld [vmem:[#allocation2] sm:$0xff]
    %v33 = vld [vmem:[%s1] sm:$0xff]
    %v34 = vld [vmem:[%s1 + $0x8] sm:$0xff]
    %v35 = vld [vmem:[%s1 + $0x10] sm:$0xff]
    %v36 = vld [vmem:[%s1 + $0x18] sm:$0xff]
    %v37 = vld [vmem:[%s1 + $0x20] sm:$0xff]
    %v38 = vld [vmem:[%s1 + $0x28] sm:$0xff]
    %v39 = vld [vmem:[%s1 + $0x30] sm:$0xff]
    %v40 = vld [vmem:[%s1 + $0x38] sm:$0xff]
    %vm41 = vcmask 261120
    %v43 = vsel %vm41, %v31, 0
    %v46 = vsel %vm41, %v33, 0
    %v49 = vsel %vm41, %v34, 0
    %v52 = vsel %vm41, %v35, 0
    %v55 = vsel %vm41, %v36, 0
    %v58 = vsel %vm41, %v37, 0
    %v61 = vsel %vm41, %v38, 0
    %v64 = vsel %vm41, %v39, 0
    %v67 = vsel %vm41, %v40, 0
    %69 = vmatprep.subr.mxu0 0.0
    %70 = vmatpush1.xpose.msra.mxu0 %v46
    %71 = vmatprep.subr.mxu0 0.0
    %72 = vmatpush1.xpose.msra.mxu0 %v49
    %73 = vmatprep.subr.mxu0 0.0
    %74 = vmatpush1.xpose.msra.mxu0 %v52
    %75 = vmatprep.subr.mxu0 0.0
    %76 = vmatpush1.xpose.msra.mxu0 %v55
    %77 = vmatprep.subr.mxu0 0.0
    %78 = vmatpush1.xpose.msra.mxu0 %v58
    %79 = vmatprep.subr.mxu0 0.0
    %80 = vmatpush1.xpose.msra.mxu0 %v61
    %81 = vmatprep.subr.mxu0 0.0
    %82 = vmatpush1.xpose.msra.mxu0 %v64
    %83 = vmatprep.subr.mxu0 0.0
    %84 = vmatpush1.xpose.msra.mxu0 %v67
    %85 = vmatprep.subr.mxu0 0.0
    %86 = vmatpush1.xpose.msra.mxu0 0.0
    %87 = vmatprep.subr.mxu0 0.0
    %88 = vmatpush1.xpose.msra.mxu0 0.0
    %89 = vmatprep.subr.mxu0 0.0
    %90 = vmatpush1.xpose.msra.mxu0 0.0
    %91 = vmatprep.subr.mxu0 0.0
    %92 = vmatpush1.xpose.msra.mxu0 0.0
    %93 = vmatprep.subr.mxu0 0.0
    %94 = vmatpush1.xpose.msra.mxu0 0.0
    %95 = vmatprep.subr.mxu0 0.0
    %96 = vmatpush1.xpose.msra.mxu0 0.0
    %97 = vmatprep.subr.mxu0 0.0
    %98 = vmatpush1.xpose.msra.mxu0 0.0
    %99 = vmatprep.subr.mxu0 0.0
    %100 = vmatpush1.xpose.msra.mxu0 0.0
    %101 = vmatprep.subr.mxu0 0.0
    %102 = vmatpush1.xpose.msra.mxu0 0.0
    %103 = vmatprep.subr.mxu0 0.0
    %104 = vmatpush1.xpose.msra.mxu0 0.0
    %105 = vmatprep.subr.mxu0 0.0
    %106 = vmatpush1.xpose.msra.mxu0 0.0
    %107 = vmatprep.subr.mxu0 0.0
    %108 = vmatpush1.xpose.msra.mxu0 0.0
    %109 = vmatprep.subr.mxu0 0.0
    %110 = vmatpush1.xpose.msra.mxu0 0.0
    %111 = vmatprep.subr.mxu0 0.0
    %112 = vmatpush1.xpose.msra.mxu0 0.0
    %113 = vmatprep.subr.mxu0 0.0
    %114 = vmatpush1.xpose.msra.mxu0 0.0
    %115 = vmatprep.subr.mxu0 0.0
    %116 = vmatpush1.xpose.msra.mxu0 0.0
    %117 = vmatprep.subr.mxu0 0.0
    %118 = vmatpush1.xpose.msra.mxu0 0.0
    %119 = vmatprep.subr.mxu0 0.0
    %120 = vmatpush1.xpose.msra.mxu0 0.0
    %121 = vmatprep.subr.mxu0 0.0
    %122 = vmatpush1.xpose.msra.mxu0 0.0
    %123 = vmatprep.subr.mxu0 0.0
    %124 = vmatpush1.xpose.msra.mxu0 0.0
    %125 = vmatprep.subr.mxu0 0.0
    %126 = vmatpush1.xpose.msra.mxu0 0.0
    %127 = vmatprep.subr.mxu0 0.0
    %128 = vmatpush1.xpose.msra.mxu0 0.0
    %129 = vmatprep.subr.mxu0 0.0
    %130 = vmatpush1.xpose.msra.mxu0 0.0
    %131 = vmatprep.subr.mxu0 0.0
    %132 = vmatpush1.xpose.msra.mxu0 0.0
    %133 = vmatprep.mubr.f32.mxu0 0.0
    %134 = vmatmul.mubr.f32.gmra.mrb[0].mxu0 %v43
    %v135 = vpop.f32.mrb[0].mxu0
    %v136 = vadd.f32 0.0, %v135
    %v137 = vpop.f32.mrb[0].mxu0
    %138 = vdwg.mxu0
    %v139 = vadd.f32 %v32, %v136
    %vm140 = vcmask 523264
    %141 = vst.msk [vmem:[#allocation2] sm:$0xff] %vm140, %v139
    %v142 = vld [vmem:[%s3] sm:$0x1]
    %v144 = vlaneseq
    %v145 = vshrl.u32 %v144, 7
    %v146 = vsub.s32 0, %v145
    %v147 = vrot.slane %v142, %v146
    %v149 = vmul.f32 %v31, %v147
    %v150 = vld [vmem:[#allocation3] sm:$0xff]
    %v151 = vld [vmem:[%s2] sm:$0xff]
    %v152 = vld [vmem:[%s2 + $0x8] sm:$0xff]
    %v153 = vld [vmem:[%s2 + $0x10] sm:$0xff]
    %v154 = vld [vmem:[%s2 + $0x18] sm:$0xff]
    %v155 = vld [vmem:[%s2 + $0x20] sm:$0xff]
    %v156 = vld [vmem:[%s2 + $0x28] sm:$0xff]
    %v157 = vld [vmem:[%s2 + $0x30] sm:$0xff]
    %v158 = vld [vmem:[%s2 + $0x38] sm:$0xff]
    %v160 = vsel %vm41, %v149, 0
    %v163 = vsel %vm41, %v151, 0
    %v166 = vsel %vm41, %v152, 0
    %v169 = vsel %vm41, %v153, 0
    %v172 = vsel %vm41, %v154, 0
    %v175 = vsel %vm41, %v155, 0
    %v178 = vsel %vm41, %v156, 0
    %v181 = vsel %vm41, %v157, 0
    %v184 = vsel %vm41, %v158, 0
    %186 = vmatprep.subr.mxu0 0.0
    %187 = vmatpush1.xpose.msra.mxu0 %v163
    %188 = vmatprep.subr.mxu0 0.0
    %189 = vmatpush1.xpose.msra.mxu0 %v166
    %190 = vmatprep.subr.mxu0 0.0
    %191 = vmatpush1.xpose.msra.mxu0 %v169
    %192 = vmatprep.subr.mxu0 0.0
    %193 = vmatpush1.xpose.msra.mxu0 %v172
    %194 = vmatprep.subr.mxu0 0.0
    %195 = vmatpush1.xpose.msra.mxu0 %v175
    %196 = vmatprep.subr.mxu0 0.0
    %197 = vmatpush1.xpose.msra.mxu0 %v178
    %198 = vmatprep.subr.mxu0 0.0
    %199 = vmatpush1.xpose.msra.mxu0 %v181
    %200 = vmatprep.subr.mxu0 0.0
    %201 = vmatpush1.xpose.msra.mxu0 %v184
    %202 = vmatprep.subr.mxu0 0.0
    %203 = vmatpush1.xpose.msra.mxu0 0.0
    %204 = vmatprep.subr.mxu0 0.0
    %205 = vmatpush1.xpose.msra.mxu0 0.0
    %206 = vmatprep.subr.mxu0 0.0
    %207 = vmatpush1.xpose.msra.mxu0 0.0
    %208 = vmatprep.subr.mxu0 0.0
    %209 = vmatpush1.xpose.msra.mxu0 0.0
    %210 = vmatprep.subr.mxu0 0.0
    %211 = vmatpush1.xpose.msra.mxu0 0.0
    %212 = vmatprep.subr.mxu0 0.0
    %213 = vmatpush1.xpose.msra.mxu0 0.0
    %214 = vmatprep.subr.mxu0 0.0
    %215 = vmatpush1.xpose.msra.mxu0 0.0
    %216 = vmatprep.subr.mxu0 0.0
    %217 = vmatpush1.xpose.msra.mxu0 0.0
    %218 = vmatprep.subr.mxu0 0.0
    %219 = vmatpush1.xpose.msra.mxu0 0.0
    %220 = vmatprep.subr.mxu0 0.0
    %221 = vmatpush1.xpose.msra.mxu0 0.0
    %222 = vmatprep.subr.mxu0 0.0
    %223 = vmatpush1.xpose.msra.mxu0 0.0
    %224 = vmatprep.subr.mxu0 0.0
    %225 = vmatpush1.xpose.msra.mxu0 0.0
    %226 = vmatprep.subr.mxu0 0.0
    %227 = vmatpush1.xpose.msra.mxu0 0.0
    %228 = vmatprep.subr.mxu0 0.0
    %229 = vmatpush1.xpose.msra.mxu0 0.0
    %230 = vmatprep.subr.mxu0 0.0
    %231 = vmatpush1.xpose.msra.mxu0 0.0
    %232 = vmatprep.subr.mxu0 0.0
    %233 = vmatpush1.xpose.msra.mxu0 0.0
    %234 = vmatprep.subr.mxu0 0.0
    %235 = vmatpush1.xpose.msra.mxu0 0.0
    %236 = vmatprep.subr.mxu0 0.0
    %237 = vmatpush1.xpose.msra.mxu0 0.0
    %238 = vmatprep.subr.mxu0 0.0
    %239 = vmatpush1.xpose.msra.mxu0 0.0
    %240 = vmatprep.subr.mxu0 0.0
    %241 = vmatpush1.xpose.msra.mxu0 0.0
    %242 = vmatprep.subr.mxu0 0.0
    %243 = vmatpush1.xpose.msra.mxu0 0.0
    %244 = vmatprep.subr.mxu0 0.0
    %245 = vmatpush1.xpose.msra.mxu0 0.0
    %246 = vmatprep.subr.mxu0 0.0
    %247 = vmatpush1.xpose.msra.mxu0 0.0
    %248 = vmatprep.subr.mxu0 0.0
    %249 = vmatpush1.xpose.msra.mxu0 0.0
    %250 = vmatprep.mubr.f32.mxu0 0.0
    %251 = vmatmul.mubr.f32.gmra.mrb[0].mxu0 %v160
    %v252 = vpop.f32.mrb[0].mxu0
    %v253 = vadd.f32 0.0, %v252
    %v254 = vpop.f32.mrb[0].mxu0
    %255 = vdwg.mxu0
    %v256 = vadd.f32 %v150, %v253
    %257 = vst.msk [vmem:[#allocation3] sm:$0xff] %vm140, %v256
    // Predicated region
    $region30: #{tpu_custom_call.1} parent=1 // pred_check
      %p258 = pneg %p24
    $region31: #{tpu_custom_call.1} parent=1 // pred_check_branch
      %260 = sbr.rel (%p258) target = $region33
    $region32: #{tpu_custom_call.1} parent=1 // pred_region
      %v261 = vld [vmem:[#allocation2] sm:$0xff]
      %v262 = vld [vmem:[#allocation3] sm:$0xff]
      %v263 = vld [vmem:[%s4] sm:$0x1]
      %v265 = vlaneseq
      %v266 = vshrl.u32 %v265, 7
      %v267 = vsub.s32 0, %v266
      %v268 = vrot.slane %v263, %v267
      %v270 = vmul.f32 %v262, %v268
      %v271 = vadd.f32 %v261, %v270
      %v272 = vld [vmem:[%s5] sm:$0x1]
      %v274 = vlaneseq
      %v275 = vshrl.u32 %v274, 7
      %v276 = vsub.s32 0, %v275
      %v277 = vrot.slane %v272, %v276
      %v279 = vadd.f32 %v271, %v277
      %280 = vst.msk [vmem:[#allocation4] sm:$0xff] %vm140, %v279
    $region33: #{tpu_custom_call.1} parent=1 // pred_fallthru
      _
    // Predicated region
    $region34: #{tpu_custom_call.1} parent=1 // pred_check
      _
    $region35: #{tpu_custom_call.1} parent=1 // pred_check_branch
      %282 = sbr.rel (0) target = $region37
    $region36: #{tpu_custom_call.1} parent=1 // pred_region
      %s284 = ssub.s32 128, 128
      %285 = vsyncadd [#allocation5], %s284
      %s287 = sshll.u32 [#allocation4], 4
      %s288 = int_to_ptr.vmem [resolvable:$true] %s287
      %290 = dma.vmem_to_hbm [thread:$0]  %s288, 128, %s6, [#allocation5]
    $region37: #{tpu_custom_call.1} parent=1 // pred_fallthru
      _
    // Predicated region
    $region38: #{tpu_custom_call.1} parent=1 // pred_check
      _
    $region39: #{tpu_custom_call.1} parent=1 // pred_check_branch
      %292 = sbr.rel (0) target = $region41
    $region40: #{tpu_custom_call.1} parent=1 // pred_region
      %293 = dma.done [#allocation5], 128
    $region41: #{tpu_custom_call.1} parent=1 // pred_fallthru
      _
    %294 = vsyncpa [#allocation5], 1

</llo_original>
